<compile_context>
chip_gen: v7x
topology: tpu7x:2x2x1
jax: 0.10.0
libtpu: 0.0.40
codegen_flags: <defaults>
</compile_context>

<pallas_src>
import jax
import jax.numpy as jnp
from jax import lax
from jax.experimental import pallas as pl
from jax.experimental.pallas import tpu as pltpu


LANE = 128
_MAX_LANE_TILE = 65536       # hard cap on lanes per grid step
_FULL_EXTENT_MAX = 2048      # below this, take the whole lane extent as one block
_VPU_SUBCHUNK = 2048         # lane sub-chunk for the VPU path (keeps acc in vregs)


def _round_up(x, m):
    return (x + m - 1) // m * m


def _vmem_limit_bytes():
    """Scoped-VMEM limit: ~half of physical, capped at 64 MiB.

    v5e/v6e (128 MiB physical) -> 64 MiB; v7x (64 MiB physical) -> 32 MiB.
    Falls back to a safe 32 MiB if the hardware query is unavailable.
    """
    phys = 64 * 1024 * 1024
    try:
        phys = int(pltpu.get_tpu_info().vmem_capacity_bytes)
    except Exception:
        pass
    return min(phys // 2, 64 * 1024 * 1024)


def _pick_lane_tile(lane_extent, c_in, c_out, itemsize, vmem_limit, want_two_tiles):
    """Largest lane tile (multiple of 128) whose pipelined x+out buffers fit VMEM."""
    # Up to 3-deep buffering on x and out, plus the f32 intermediate on the MXU path;
    # keep ~30% headroom for scratch / resident weight+bias.
    per_lane = 3 * (c_in + c_out) * itemsize + 4 * c_out
    cap = int(vmem_limit * 0.7) // max(per_lane, 1)
    cap = max(LANE, min(cap // LANE * LANE, _MAX_LANE_TILE))
    if cap >= _VPU_SUBCHUNK:
        cap = cap // _VPU_SUBCHUNK * _VPU_SUBCHUNK
    if want_two_tiles and lane_extent > 2 * LANE:
        # Keep >=2 grid steps so the "parallel" axis can shard across 2 TensorCores (v7x).
        cap = min(cap, _round_up((lane_extent + 1) // 2, LANE))
    if lane_extent <= min(cap, _FULL_EXTENT_MAX):
        return lane_extent                          # single full-extent block, no raggedness
    return min(cap, _round_up(lane_extent, LANE))   # multiple of 128; last block may be ragged


def _pick_subchunk(tl):
    for cand in (_VPU_SUBCHUNK, 1024, 512, 256, LANE):
        if tl % cand == 0:
            return cand
    return tl


def _make_kernel(c_in, c_out, tl, use_mxu):
    sub = tl if use_mxu else _pick_subchunk(tl)
    n_sub = max(tl // sub, 1)

    def kernel(x_ref, w_ref, b_ref, o_ref):
        # x_ref: (c_in, tl) lane tile;  w_ref: (c_out, c_in), b_ref: (c_out, 1) resident.
        if use_mxu:
            # Native-dtype operands into the MXU; f32 accumulation.
            y = jnp.dot(w_ref[...], x_ref[...], preferred_element_type=jnp.float32)
            o_ref[...] = (y + b_ref[...].astype(jnp.float32)).astype(o_ref.dtype)
            return

        # VPU broadcast-FMA path for small channel counts (avoids an MXU sliver).
        # Weight columns / bias are loaded and cast once, outside the lane-chunk loop.
        w_cols = [w_ref[:, ci:ci + 1].astype(jnp.float32) for ci in range(c_in)]
        b = b_ref[...].astype(jnp.float32)

        def do_chunk(start):
            xs = x_ref[:, pl.ds(start, sub)].astype(jnp.float32)
            acc = w_cols[0] * xs[0:1, :]
            for ci in range(1, c_in):                 # static unroll; c_in small here
                acc = acc + w_cols[ci] * xs[ci:ci + 1, :]
            o_ref[:, pl.ds(start, sub)] = (acc + b).astype(o_ref.dtype)

        if n_sub == 1:
            do_chunk(0)
        else:
            def body(s, carry):
                do_chunk(pl.multiple_of(s * sub, sub))
                return carry
            lax.fori_loop(0, n_sub, body, 0, unroll=(n_sub <= 16))

    return kernel


def outconv(x, weight, bias=None):
    """Conv1d(kernel_size=1) forward.

    x: (N, C_in, L); weight: (C_out, C_in, 1) or (C_out, C_in); bias: (C_out,) or None.
    Returns (N, C_out, L).
    """
    if weight.ndim == 3:
        weight = weight[:, :, 0]                      # squeeze kernel_size=1
    n, c_in, length = x.shape
    c_out = weight.shape[0]

    if bias is None:
        bias = jnp.zeros((c_out,), jnp.float32)

    w2d = weight.astype(x.dtype)                      # native dtype into MXU / VPU
    b2d = bias.reshape(c_out, 1).astype(jnp.float32)

    itemsize = jnp.dtype(x.dtype).itemsize
    vmem_limit = _vmem_limit_bytes()
    use_mxu = min(c_in, c_out) >= 32
    # TODO(synk): add channel (c_in / c_out) tiling so very large channel counts do not
    # require a fully-resident weight block / exceed the VMEM limit.

    w_bytes = c_out * c_in * jnp.dtype(w2d.dtype).itemsize + c_out * 4

    if length >= 512:
        # --- direct path: grid over (batch, L-tiles), no wrapper-side transposes ----
        tl = _pick_lane_tile(length, c_in, c_out, itemsize, vmem_limit,
                             want_two_tiles=(n == 1))
        lane_steps = pl.cdiv(length, tl)
        buffered = {"pipeline_mode": pl.Buffered(3)} if n * lane_steps >= 3 else {}
        kernel = _make_kernel(c_in, c_out, tl, use_mxu)
        cost = pl.CostEstimate(
            flops=2 * c_out * c_in * n * length,
            transcendentals=0,
            bytes_accessed=(c_in + c_out) * n * length * itemsize + w_bytes)
        return pl.pallas_call(
            kernel,
            out_shape=jax.ShapeDtypeStruct((n, c_out, length), x.dtype),
            grid_spec=pltpu.PrefetchScalarGridSpec(
                num_scalar_prefetch=0,
                grid=(n, lane_steps),
                in_specs=[
                    pl.BlockSpec((None, c_in, tl), lambda b, t: (b, 0, t), **buffered),
                    pl.BlockSpec((c_out, c_in), lambda b, t: (0, 0)),   # resident weight
                    pl.BlockSpec((c_out, 1), lambda b, t: (0, 0)),      # resident bias
                ],
                out_specs=pl.BlockSpec((None, c_out, tl), lambda b, t: (b, 0, t),
                                       **buffered),
            ),
            compiler_params=pltpu.CompilerParams(
                dimension_semantics=("parallel", "parallel"),
                vmem_limit_bytes=vmem_limit),
            cost_estimate=cost,
        )(x, w2d, b2d)

    # --- small-L path: fold batch into lanes so the output stays lane-dense ---------
    total = n * length
    x2d = jnp.transpose(x, (1, 0, 2)).reshape(c_in, total)
    tl = _pick_lane_tile(total, c_in, c_out, itemsize, vmem_limit, want_two_tiles=True)
    lane_steps = pl.cdiv(total, tl)
    buffered = {"pipeline_mode": pl.Buffered(3)} if lane_steps >= 3 else {}
    kernel = _make_kernel(c_in, c_out, tl, use_mxu)
    cost = pl.CostEstimate(
        flops=2 * c_out * c_in * total,
        transcendentals=0,
        bytes_accessed=(c_in + c_out) * total * itemsize + w_bytes)
    out2d = pl.pallas_call(
        kernel,
        out_shape=jax.ShapeDtypeStruct((c_out, total), x.dtype),
        grid_spec=pltpu.PrefetchScalarGridSpec(
            num_scalar_prefetch=0,
            grid=(lane_steps,),
            in_specs=[
                pl.BlockSpec((c_in, tl), lambda t: (0, t), **buffered),
                pl.BlockSpec((c_out, c_in), lambda t: (0, 0)),
                pl.BlockSpec((c_out, 1), lambda t: (0, 0)),
            ],
            out_specs=pl.BlockSpec((c_out, tl), lambda t: (0, t), **buffered),
        ),
        compiler_params=pltpu.CompilerParams(
            dimension_semantics=("parallel",),
            vmem_limit_bytes=vmem_limit),
        cost_estimate=cost,
    )(x2d, w2d, b2d)
    return jnp.transpose(out2d.reshape(c_out, n, length), (1, 0, 2))


if __name__ == "__main__":
    # Module config: OutConv(in_channels=4, out_channels=8)
    in_channels, out_channels = 4, 8
    batch, length = 2, 16

    key = jax.random.PRNGKey(0)
    kx, kw, kb, kx2 = jax.random.split(key, 4)

    # PyTorch-style uniform(-1/sqrt(fan_in), 1/sqrt(fan_in)) init (kernel_size = 1)
    bound = 1.0 / (in_channels ** 0.5)
    weight = jax.random.uniform(kw, (out_channels, in_channels, 1),
                                minval=-bound, maxval=bound, dtype=jnp.float32)
    bias = jax.random.uniform(kb, (out_channels,),
                              minval=-bound, maxval=bound, dtype=jnp.float32)

    # Small shape -> folded (batch-into-lanes) path.
    x = jax.random.normal(kx, (batch, in_channels, length), dtype=jnp.float32)
    out = jax.block_until_ready(outconv(x, weight, bias))
    ref = jnp.einsum("oc,ncl->nol", weight[:, :, 0], x) + bias[None, :, None]
    assert out.shape == (batch, out_channels, length)
    assert jnp.allclose(out, ref, atol=1e-5, rtol=1e-5)

    # Larger L -> direct (no-transpose) path with in-kernel lane sub-chunking.
    x2 = jax.random.normal(kx2, (batch, in_channels, 4096), dtype=jnp.float32)
    out2 = jax.block_until_ready(outconv(x2, weight, bias))
    ref2 = jnp.einsum("oc,ncl->nol", weight[:, :, 0], x2) + bias[None, :, None]
    assert jnp.allclose(out2, ref2, atol=1e-5, rtol=1e-5)

    print("KERNEL_OK")
</pallas_src>

<mosaic_0001>
module attributes {stable_mosaic.version = 11 : i64} {
  func.func @kernel(%arg0: i32, %arg1: memref<4x32xf32, #tpu.memory_space<vmem>>, %arg2: memref<8x4xf32, #tpu.memory_space<vmem>>, %arg3: memref<8x1xf32, #tpu.memory_space<vmem>>, %arg4: memref<8x32xf32, #tpu.memory_space<vmem>>) attributes {dimension_semantics = [#tpu.dimension_semantics<parallel>], iteration_bounds = array<i64: 1>, scalar_prefetch = 0 : i64, scratch_operands = 0 : i64, tpu.core_type = #tpu.core_type<tc>, window_params = [{transform_indices = @transform_0, window_bounds = array<i64: 4, 32>}, {pipeline_mode = #tpu.pipeline_mode<synchronous>, transform_indices = @transform_1, window_bounds = array<i64: 8, 4>}, {pipeline_mode = #tpu.pipeline_mode<synchronous>, transform_indices = @transform_2, window_bounds = array<i64: 8, 1>}, {transform_indices = @transform_3, window_bounds = array<i64: 8, 32>}]} {
    %c0 = arith.constant 0 : index
    %c0_0 = arith.constant 0 : index
    %0 = vector.load %arg2[%c0, %c0_0] : memref<8x4xf32, #tpu.memory_space<vmem>>, vector<8x1xf32>
    %c0_1 = arith.constant 0 : index
    %c1 = arith.constant 1 : index
    %1 = vector.load %arg2[%c0_1, %c1] : memref<8x4xf32, #tpu.memory_space<vmem>>, vector<8x1xf32>
    %c0_2 = arith.constant 0 : index
    %c2 = arith.constant 2 : index
    %2 = vector.load %arg2[%c0_2, %c2] : memref<8x4xf32, #tpu.memory_space<vmem>>, vector<8x1xf32>
    %c0_3 = arith.constant 0 : index
    %c3 = arith.constant 3 : index
    %3 = vector.load %arg2[%c0_3, %c3] : memref<8x4xf32, #tpu.memory_space<vmem>>, vector<8x1xf32>
    %c0_4 = arith.constant 0 : index
    %c0_5 = arith.constant 0 : index
    %4 = vector.load %arg3[%c0_4, %c0_5] : memref<8x1xf32, #tpu.memory_space<vmem>>, vector<8x1xf32>
    %c0_6 = arith.constant 0 : index
    %c0_7 = arith.constant 0 : index
    %5 = vector.load %arg1[%c0_6, %c0_7] : memref<4x32xf32, #tpu.memory_space<vmem>>, vector<4x32xf32>
    %6 = vector.extract_strided_slice %5 {offsets = [0, 0], sizes = [1, 32], strides = [1, 1]} : vector<4x32xf32> to vector<1x32xf32>
    %7 = vector.broadcast %0 : vector<8x1xf32> to vector<8x32xf32>
    %8 = vector.broadcast %6 : vector<1x32xf32> to vector<8x32xf32>
    %9 = arith.mulf %7, %8 : vector<8x32xf32>
    %10 = vector.extract_strided_slice %5 {offsets = [1, 0], sizes = [1, 32], strides = [1, 1]} : vector<4x32xf32> to vector<1x32xf32>
    %11 = vector.broadcast %1 : vector<8x1xf32> to vector<8x32xf32>
    %12 = vector.broadcast %10 : vector<1x32xf32> to vector<8x32xf32>
    %13 = arith.mulf %11, %12 : vector<8x32xf32>
    %14 = arith.addf %9, %13 : vector<8x32xf32>
    %15 = vector.extract_strided_slice %5 {offsets = [2, 0], sizes = [1, 32], strides = [1, 1]} : vector<4x32xf32> to vector<1x32xf32>
    %16 = vector.broadcast %2 : vector<8x1xf32> to vector<8x32xf32>
    %17 = vector.broadcast %15 : vector<1x32xf32> to vector<8x32xf32>
    %18 = arith.mulf %16, %17 : vector<8x32xf32>
    %19 = arith.addf %14, %18 : vector<8x32xf32>
    %20 = vector.extract_strided_slice %5 {offsets = [3, 0], sizes = [1, 32], strides = [1, 1]} : vector<4x32xf32> to vector<1x32xf32>
    %21 = vector.broadcast %3 : vector<8x1xf32> to vector<8x32xf32>
    %22 = vector.broadcast %20 : vector<1x32xf32> to vector<8x32xf32>
    %23 = arith.mulf %21, %22 : vector<8x32xf32>
    %24 = arith.addf %19, %23 : vector<8x32xf32>
    %25 = vector.broadcast %4 : vector<8x1xf32> to vector<8x32xf32>
    %26 = arith.addf %24, %25 : vector<8x32xf32>
    %c0_8 = arith.constant 0 : index
    %c0_9 = arith.constant 0 : index
    %27 = vector.load %arg4[%c0_8, %c0_9] : memref<8x32xf32, #tpu.memory_space<vmem>>, vector<8x32xf32>
    tpu.vector_store %arg4[%c0_8, %c0_9], %26 {strides = array<i32>} : memref<8x32xf32, #tpu.memory_space<vmem>>, vector<8x32xf32>,
    return
  }
  func.func @transform_0(%arg0: i32) -> (i32, i32) {
    %c0_i32 = arith.constant 0 : i32
    %c0_i32_0 = arith.constant 0 : i32
    return %c0_i32, %arg0 : i32, i32
  }
  func.func @transform_1(%arg0: i32) -> (i32, i32) {
    %c0_i32 = arith.constant 0 : i32
    %c0_i32_0 = arith.constant 0 : i32
    %c0_i32_1 = arith.constant 0 : i32
    return %c0_i32, %c0_i32_0 : i32, i32
  }
  func.func @transform_2(%arg0: i32) -> (i32, i32) {
    %c0_i32 = arith.constant 0 : i32
    %c0_i32_0 = arith.constant 0 : i32
    %c0_i32_1 = arith.constant 0 : i32
    return %c0_i32, %c0_i32_0 : i32, i32
  }
  func.func @transform_3(%arg0: i32) -> (i32, i32) {
    %c0_i32 = arith.constant 0 : i32
    %c0_i32_0 = arith.constant 0 : i32
    return %c0_i32, %arg0 : i32, i32
  }
}

</mosaic_0001>

<llo_original>
// kernel: tpu_custom_call.1
$region0: #{tpu_custom_call.1}
  #allocation0 [shape = 'u32[]', space=smem, size = 0x4, offset = 0x4, fixed_abs, tag = 'smem constant byte address 0x4 - core index']
  #allocation1 [shape = 'u32[144,128]{1,0:T(1,128)}', space=vmem, size = 0x12000, scoped, tag = 'internal scratch']
  %s0 = inlined_call_operand.vmem [shape: f32[4,32], index: 0, kind: input, shape index: {}]
  %s1 = inlined_call_operand.vmem [shape: f32[8,4], index: 1, kind: input, shape index: {}]
  %s2 = inlined_call_operand.vmem [shape: f32[8,1], index: 2, kind: input, shape index: {}]
  %s3 = inlined_call_operand.hbm [shape: f32[8,32], index: 3, kind: output, shape index: {}]
  %s4 = sld [smem:[#allocation0]]
  $region22: #{tpu_custom_call.1} parent=0
    _
  %s6 = ssub.s32 1, %s4
  %s7 = scalar_select 0, %s6, %s4
  $region1: #{tpu_custom_call.1} parent=0
    #allocation2 [shape = 'u8[4096]{0}', space=vmem, size = 0x1000, scoped, tag = 'output window, operand 0, single buffered']
    #allocation3 [shape = 's32[1]{0}', space=sflag, size = 0x4, scoped, tag = 'scoped memory for tpu_custom_call.1']
    %8 = vsyncpa [#allocation3], 0
    // Predicated region
    $region2: #{tpu_custom_call.1} parent=1 // pred_check
      _
    $region3: #{tpu_custom_call.1} parent=1 // pred_check_branch
      %10 = sbr.rel (0) target = $region5
    $region4: #{tpu_custom_call.1} parent=1 // pred_region
      _
    $region5: #{tpu_custom_call.1} parent=1 // pred_fallthru
      _
    // Predicated region
    $region6: #{tpu_custom_call.1} parent=1 // pred_check
      _
    $region7: #{tpu_custom_call.1} parent=1 // pred_check_branch
      %12 = sbr.rel (0) target = $region9
    $region8: #{tpu_custom_call.1} parent=1 // pred_region
      _
    $region9: #{tpu_custom_call.1} parent=1 // pred_fallthru
      _
    // Predicated region
    $region10: #{tpu_custom_call.1} parent=1 // pred_check
      _
    $region11: #{tpu_custom_call.1} parent=1 // pred_check_branch
      %14 = sbr.rel (0) target = $region13
    $region12: #{tpu_custom_call.1} parent=1 // pred_region
      _
    $region13: #{tpu_custom_call.1} parent=1 // pred_fallthru
      _
    %v15 = vld [vmem:[%s1] sm:$0xff]
    %v16 = vld [vmem:[%s2] sm:$0xff]
    %v17 = vld [vmem:[%s0] sm:$0xf]
    %19 = vset.pattern.permute.xlu0 0
    %20 = vperm.xlu0 %19, %v15
    %v21 = vpop.permute.xlu0 %20
    %v23 = vlaneseq
    %v24 = vshrl.u32 %v23, 7
    %v25 = vsub.s32 0, %v24
    %v26 = vrot.slane %v17, %v25
    %v27 = vmul.f32 %v21, %v26
    %28 = vset.pattern.permute.xlu0 1
    %29 = vperm.xlu0 %28, %v15
    %v30 = vpop.permute.xlu0 %29
    %v32 = vlaneseq
    %v33 = vshrl.u32 %v32, 7
    %v34 = vsub.s32 1, %v33
    %v35 = vrot.slane %v17, %v34
    %v36 = vmul.f32 %v30, %v35
    %v37 = vadd.f32 %v27, %v36
    %38 = vset.pattern.permute.xlu0 2
    %39 = vperm.xlu0 %38, %v15
    %v40 = vpop.permute.xlu0 %39
    %v42 = vlaneseq
    %v43 = vshrl.u32 %v42, 7
    %v44 = vsub.s32 2, %v43
    %v45 = vrot.slane %v17, %v44
    %v46 = vmul.f32 %v40, %v45
    %v47 = vadd.f32 %v37, %v46
    %48 = vset.pattern.permute.xlu0 3
    %49 = vperm.xlu0 %48, %v15
    %v50 = vpop.permute.xlu0 %49
    %v52 = vlaneseq
    %v53 = vshrl.u32 %v52, 7
    %v54 = vsub.s32 3, %v53
    %v55 = vrot.slane %v17, %v54
    %v56 = vmul.f32 %v50, %v55
    %v57 = vadd.f32 %v47, %v56
    %59 = vset.pattern.permute.xlu0 0
    %60 = vperm.xlu0 %59, %v16
    %v61 = vpop.permute.xlu0 %60
    %v63 = vadd.f32 %v57, %v61
    %vm64 = vcmask 261120
    %65 = vst.msk [vmem:[#allocation2] sm:$0xff] %vm64, %v63
    // Predicated region
    $region14: #{tpu_custom_call.1} parent=1 // pred_check
      _
    $region15: #{tpu_custom_call.1} parent=1 // pred_check_branch
      %67 = sbr.rel (0) target = $region17
    $region16: #{tpu_custom_call.1} parent=1 // pred_region
      %s69 = ssub.s32 128, 128
      %70 = vsyncadd [#allocation3], %s69
      %s72 = sshll.u32 [#allocation2], 4
      %s73 = int_to_ptr.vmem [resolvable:$true] %s72
      %75 = dma.vmem_to_hbm [thread:$0]  %s73, 128, %s3, [#allocation3]
    $region17: #{tpu_custom_call.1} parent=1 // pred_fallthru
      _
    // Predicated region
    $region18: #{tpu_custom_call.1} parent=1 // pred_check
      _
    $region19: #{tpu_custom_call.1} parent=1 // pred_check_branch
      %77 = sbr.rel (0) target = $region21
    $region20: #{tpu_custom_call.1} parent=1 // pred_region
      %78 = dma.done [#allocation3], 128
    $region21: #{tpu_custom_call.1} parent=1 // pred_fallthru
      _
    %79 = vsyncpa [#allocation3], 1

</llo_original>
